<compile_context>
chip_gen: v6e
topology: v6e:2x2x1
jax: 0.10.0
libtpu: 0.0.40
codegen_flags: <defaults>
</compile_context>

<pallas_src>
import jax
import jax.numpy as jnp
from jax.experimental import pallas as pl
from jax.experimental.pallas import tpu as pltpu


def _round_up(x, n):
    return ((x + n - 1) // n) * n


def _vmem_budget_bytes():
    """~75% of per-core physical VMEM, capped at 100 MiB.

    v5e/v6e (128 MiB physical) -> ~96 MiB; v7x (64 MiB physical) -> ~48 MiB.
    Falls back to the conservative 48 MiB if the hardware query is unavailable.
    """
    cap = 64 * 1024 * 1024
    try:
        info = pltpu.get_tpu_info()
        c = getattr(info, "vmem_capacity_bytes", None)
        if c:
            cap = int(c)
    except Exception:
        pass
    return min((cap * 3) // 4, 100 * 1024 * 1024)


def _choose_tile_b(batch, dim, stream_itemsize, weight_bytes, budget_bytes):
    """Largest batch tile whose 4 streamed (TB, D) inputs (double-buffered,
    lane-padded) plus the resident weight fit inside the device VMEM budget,
    while keeping >=2 grid steps for megacore sharding when batch allows."""
    dp = _round_up(dim, 128)                       # VMEM lane dim pads to 128
    bytes_per_row = 4 * 2 * dp * stream_itemsize   # 4 streams x 2 buffers
    slack = 4 * 1024 * 1024                        # outputs + compiler scratch
    usable = budget_bytes - weight_bytes - slack
    # TODO(synk): for very large D (f32 weight >= ~32-64 MiB) the weight cannot
    # stay resident; it should be column-tiled on a second "arbitrary" grid
    # axis with a per-row accumulator instead of this minimum-tile fallback.
    tb = max(8, usable // bytes_per_row) if usable > 0 else 8
    # Keep >=2 (ideally 4) grid steps so v7x megacore can shard the parallel
    # batch axis and DMA/compute overlap exists (only when tiles stay
    # sublane-aligned, i.e. multiples of 8).
    if batch >= 32:
        tb = min(tb, _round_up(pl.cdiv(batch, 4), 8))
    elif batch >= 16:
        tb = min(tb, _round_up(pl.cdiv(batch, 2), 8))
    if tb >= batch:
        return int(batch)                 # single full-extent block is legal
    if tb >= 128:
        tb = (tb // 128) * 128
    else:
        tb = max(8, (tb // 8) * 8)
    return int(tb)


def _make_kernel(batch, tile_b, margin):
    margin = float(margin)

    def kernel(a_is_ref, a_em_ref, m_ref, trm_ref, w_ref, out_ref):
        # Stream in native dtype; upcast in-register only.
        a_diff = (a_is_ref[...].astype(jnp.float32)
                  - a_em_ref[...].astype(jnp.float32))
        c = (0.4 * m_ref[...].astype(jnp.float32)
             + 0.6 * trm_ref[...].astype(jnp.float32))
        # Single MXU matmul; nn.Linear bias cancels in the is/em difference.
        cw = jnp.dot(c, w_ref[...].astype(jnp.float32),
                     preferred_element_type=jnp.float32)            # (TB, D)
        val = jnp.sum(a_diff * cw, axis=-1, keepdims=True)          # (TB, 1)
        cost = jnp.maximum(margin + val, 0.0)
        # Mask rows of a ragged last tile (block may extend past the batch).
        row = (jax.lax.broadcasted_iota(jnp.int32, (tile_b, 1), 0)
               + pl.program_id(0) * tile_b)
        cost = jnp.where(row < batch, cost, 0.0)
        # Lane-dense, (8,128)-aligned per-tile partial; wrapper sums partials.
        out_ref[...] = jnp.full((1, 8, 128), jnp.sum(cost), dtype=jnp.float32)

    return kernel


def contrastive_loss_rec(a_is_t, a_em_t, m, tr_m, weight, bias, margin=0.0,
                         *, tile_b=None):
    """Pallas implementation of ContrastiveLoss_rec.forward.

    a_is_t, a_em_t, m, tr_m : (B, D) arrays (any float dtype; streamed as-is)
    weight : (D, D) nn.Linear weight (out_features, in_features), untransposed
    bias   : (D,)   nn.Linear bias (cancels algebraically; accepted for parity)
    Returns (1,) float32, matching cost_s.sum(0).
    """
    del bias  # exact cancellation in diag_is_all - diag_em_all
    B, D = m.shape
    dp = _round_up(D, 128)
    stream_itemsize = max(jnp.dtype(x.dtype).itemsize
                          for x in (a_is_t, a_em_t, m, tr_m))
    # Resident weight, double-buffered by the default pipeliner, lane-padded.
    weight_bytes = 2 * _round_up(D, 8) * dp * jnp.dtype(weight.dtype).itemsize

    budget = _vmem_budget_bytes()
    if tile_b is None:
        tile_b = _choose_tile_b(B, D, stream_itemsize, weight_bytes, budget)
    tile_b = min(int(tile_b), B)
    num_tiles = pl.cdiv(B, tile_b)

    # Raise the scoped-VMEM limit to the device-aware budget (covers the
    # estimated footprint even in degenerate configs).
    est_vmem = (weight_bytes
                + 4 * 2 * _round_up(tile_b, 8) * dp * stream_itemsize
                + 2 * 8 * 128 * 4            # double-buffered output tile
                + 2 * 1024 * 1024)           # compiler-internal slack
    vmem_limit = int(max(budget, est_vmem))

    row_spec = pl.BlockSpec((tile_b, D), lambda i: (i, 0))
    in_specs = [
        row_spec, row_spec, row_spec, row_spec,   # streamed (TB, D) inputs
        pl.BlockSpec((D, D), lambda i: (0, 0)),   # weight, resident
    ]
    out_spec = pl.BlockSpec((1, 8, 128), lambda i: (i, 0, 0))

    partials = pl.pallas_call(
        _make_kernel(B, tile_b, margin),
        out_shape=jax.ShapeDtypeStruct((num_tiles, 8, 128), jnp.float32),
        grid=(num_tiles,),
        in_specs=in_specs,
        out_specs=out_spec,
        compiler_params=pltpu.CompilerParams(
            dimension_semantics=("parallel",),
            vmem_limit_bytes=vmem_limit),
    )(a_is_t, a_em_t, m, tr_m, weight)

    return jnp.sum(partials[:, 0, 0]).reshape(1)


def _reference(a_is_t, a_em_t, m, tr_m, weight, bias, margin=0.0):
    # Pure-JAX reference mirroring the PyTorch code literally (full BxB scores).
    wa_is = a_is_t.astype(jnp.float32) @ weight.T.astype(jnp.float32) + bias
    wa_em = a_em_t.astype(jnp.float32) @ weight.T.astype(jnp.float32) + bias
    mf = m.astype(jnp.float32)
    trf = tr_m.astype(jnp.float32)
    scores_is = jnp.sum(mf[:, None, :] * wa_is[None, :, :], axis=-1)
    scores_em = jnp.sum(mf[:, None, :] * wa_em[None, :, :], axis=-1)
    scores_is_trm = jnp.sum(trf[:, None, :] * wa_is[None, :, :], axis=-1)
    scores_em_trm = jnp.sum(trf[:, None, :] * wa_em[None, :, :], axis=-1)
    d_is = jnp.diag(scores_is)[:, None]
    d_em = jnp.diag(scores_em)[:, None]
    d_is_trm = jnp.diag(scores_is_trm)[:, None]
    d_em_trm = jnp.diag(scores_em_trm)[:, None]
    d_is_all = 0.4 * d_is + 0.6 * d_is_trm
    d_em_all = 0.6 * d_em_trm + 0.4 * d_em
    cost_s = jnp.maximum(margin + d_is_all - d_em_all, 0.0)
    return jnp.sum(cost_s, axis=0)


if __name__ == "__main__":
    def run_case(B, D, margin, key, tile_b=None, dtype=jnp.float32,
                 atol=1e-3, rtol=1e-4):
        k1, k2, k3, k4, k5, k6 = jax.random.split(key, 6)
        a_is_t = jax.random.normal(k1, (B, D), dtype=jnp.float32).astype(dtype)
        a_em_t = jax.random.normal(k2, (B, D), dtype=jnp.float32).astype(dtype)
        m = jax.random.normal(k3, (B, D), dtype=jnp.float32).astype(dtype)
        tr_m = jax.random.normal(k4, (B, D), dtype=jnp.float32).astype(dtype)
        weight = (jax.random.normal(k5, (D, D), dtype=jnp.float32)
                  / jnp.sqrt(float(D)))
        bias = jax.random.normal(k6, (D,), dtype=jnp.float32) * 0.01

        out = contrastive_loss_rec(a_is_t, a_em_t, m, tr_m, weight, bias,
                                   margin, tile_b=tile_b)
        out = jax.block_until_ready(out)
        ref = _reference(a_is_t, a_em_t, m, tr_m, weight, bias, margin)
        assert out.shape == (1,), out.shape
        assert jnp.allclose(out, ref, atol=atol, rtol=rtol), (out, ref)
        return out

    # Primary small config (batch=8, embed_dim=32), auto tile.
    run_case(B=8, D=32, margin=0.2, key=jax.random.PRNGKey(0))
    # Ragged multi-tile config: exercises the batch grid + row masking.
    run_case(B=12, D=32, margin=0.2, key=jax.random.PRNGKey(1), tile_b=8)
    # Auto tile-split path (batch>=16 -> >=2 grid steps, ragged last tile).
    run_case(B=24, D=32, margin=0.2, key=jax.random.PRNGKey(2))
    # Native bf16 streaming path (inputs stay bf16 over HBM, f32 in-register).
    run_case(B=16, D=32, margin=0.2, key=jax.random.PRNGKey(3),
             dtype=jnp.bfloat16, atol=5e-2, rtol=5e-3)

    print("KERNEL_OK")
</pallas_src>

<mosaic_0001>
module attributes {stable_mosaic.version = 11 : i64} {
  func.func @kernel(%arg0: i32, %arg1: memref<8x32xf32, #tpu.memory_space<vmem>>, %arg2: memref<8x32xf32, #tpu.memory_space<vmem>>, %arg3: memref<8x32xf32, #tpu.memory_space<vmem>>, %arg4: memref<8x32xf32, #tpu.memory_space<vmem>>, %arg5: memref<32x32xf32, #tpu.memory_space<vmem>>, %arg6: memref<1x8x128xf32, #tpu.memory_space<vmem>>) attributes {dimension_semantics = [#tpu.dimension_semantics<parallel>], iteration_bounds = array<i64: 1>, scalar_prefetch = 0 : i64, scratch_operands = 0 : i64, tpu.core_type = #tpu.core_type<tc>, window_params = [{transform_indices = @transform_0, window_bounds = array<i64: 8, 32>}, {transform_indices = @transform_1, window_bounds = array<i64: 8, 32>}, {transform_indices = @transform_2, window_bounds = array<i64: 8, 32>}, {transform_indices = @transform_3, window_bounds = array<i64: 8, 32>}, {pipeline_mode = #tpu.pipeline_mode<synchronous>, transform_indices = @transform_4, window_bounds = array<i64: 32, 32>}, {transform_indices = @transform_5, window_bounds = array<i64: 1, 8, 128>}]} {
    %c0 = arith.constant 0 : index
    %c0_0 = arith.constant 0 : index
    %0 = vector.load %arg1[%c0, %c0_0] : memref<8x32xf32, #tpu.memory_space<vmem>>, vector<8x32xf32>
    %c0_1 = arith.constant 0 : index
    %c0_2 = arith.constant 0 : index
    %1 = vector.load %arg2[%c0_1, %c0_2] : memref<8x32xf32, #tpu.memory_space<vmem>>, vector<8x32xf32>
    %2 = arith.subf %0, %1 : vector<8x32xf32>
    %c0_3 = arith.constant 0 : index
    %c0_4 = arith.constant 0 : index
    %3 = vector.load %arg3[%c0_3, %c0_4] : memref<8x32xf32, #tpu.memory_space<vmem>>, vector<8x32xf32>
    %cst = arith.constant 4.000000e-01 : f32
    %4 = vector.broadcast %cst : f32 to vector<8x32xf32>
    %5 = arith.mulf %4, %3 : vector<8x32xf32>
    %c0_5 = arith.constant 0 : index
    %c0_6 = arith.constant 0 : index
    %6 = vector.load %arg4[%c0_5, %c0_6] : memref<8x32xf32, #tpu.memory_space<vmem>>, vector<8x32xf32>
    %cst_7 = arith.constant 6.000000e-01 : f32
    %7 = vector.broadcast %cst_7 : f32 to vector<8x32xf32>
    %8 = arith.mulf %7, %6 : vector<8x32xf32>
    %9 = arith.addf %5, %8 : vector<8x32xf32>
    %c0_8 = arith.constant 0 : index
    %c0_9 = arith.constant 0 : index
    %10 = vector.load %arg5[%c0_8, %c0_9] : memref<32x32xf32, #tpu.memory_space<vmem>>, vector<32x32xf32>
    %cst_10 = arith.constant dense<0.000000e+00> : vector<8x32xf32>
    %11 = tpu.matmul %9, %10, %cst_10 {dimension_numbers = #tpu.dot_dimension_numbers<[1], [0], [0], [1], [0, 0, 1, 1], [], []>} : vector<8x32xf32>, vector<32x32xf32>, vector<8x32xf32> -> vector<8x32xf32>
    %12 = arith.mulf %2, %11 : vector<8x32xf32>
    %cst_11 = arith.constant dense<0.000000e+00> : vector<8xf32>
    %13 = vector.multi_reduction <add>, %12, %cst_11 [1] : vector<8x32xf32> to vector<8xf32>
    %14 = vector.shape_cast %13 : vector<8xf32> to vector<8x1xf32>
    %cst_12 = arith.constant 2.000000e-01 : f32
    %15 = vector.broadcast %cst_12 : f32 to vector<8x1xf32>
    %16 = arith.addf %15, %14 : vector<8x1xf32>
    %cst_13 = arith.constant 0.000000e+00 : f32
    %17 = vector.broadcast %cst_13 : f32 to vector<8x1xf32>
    %18 = arith.maximumf %16, %17 : vector<8x1xf32>
    %19 = tpu.iota {dimensions = array<i32: 0>} : vector<8x1xi32>
    %c8_i32 = arith.constant 8 : i32
    %20 = arith.muli %arg0, %c8_i32 : i32
    %21 = vector.broadcast %20 : i32 to vector<8x1xi32>
    %22 = arith.addi %19, %21 : vector<8x1xi32>
    %c8_i32_14 = arith.constant 8 : i32
    %23 = vector.broadcast %c8_i32_14 : i32 to vector<8x1xi32>
    %24 = arith.cmpi slt, %22, %23 : vector<8x1xi32>
    %cst_15 = arith.constant 0.000000e+00 : f32
    %25 = vector.broadcast %cst_15 : f32 to vector<8x1xf32>
    %26 = arith.select %24, %18, %25 : vector<8x1xi1>, vector<8x1xf32>
    %27 = vector.shape_cast %26 : vector<8x1xf32> to vector<1x8x1xf32>
    %cst_16 = arith.constant dense<0.000000e+00> : vector<1xf32>
    %28 = vector.multi_reduction <add>, %27, %cst_16 [1, 2] : vector<1x8x1xf32> to vector<1xf32>
    %29 = vector.shape_cast %28 : vector<1xf32> to vector<1x1x1xf32>
    %30 = vector.extract %29[0, 0, 0] : f32 from vector<1x1x1xf32>
    %31 = vector.broadcast %30 : f32 to vector<1x8x128xf32>
    %c0_17 = arith.constant 0 : index
    %c0_18 = arith.constant 0 : index
    %c0_19 = arith.constant 0 : index
    %32 = vector.load %arg6[%c0_17, %c0_18, %c0_19] : memref<1x8x128xf32, #tpu.memory_space<vmem>>, vector<1x8x128xf32>
    tpu.vector_store %arg6[%c0_17, %c0_18, %c0_19], %31 {strides = array<i32>} : memref<1x8x128xf32, #tpu.memory_space<vmem>>, vector<1x8x128xf32>,
    return
  }
  func.func @transform_0(%arg0: i32) -> (i32, i32) {
    %c0_i32 = arith.constant 0 : i32
    %c0_i32_0 = arith.constant 0 : i32
    return %arg0, %c0_i32 : i32, i32
  }
  func.func @transform_1(%arg0: i32) -> (i32, i32) {
    %c0_i32 = arith.constant 0 : i32
    %c0_i32_0 = arith.constant 0 : i32
    return %arg0, %c0_i32 : i32, i32
  }
  func.func @transform_2(%arg0: i32) -> (i32, i32) {
    %c0_i32 = arith.constant 0 : i32
    %c0_i32_0 = arith.constant 0 : i32
    return %arg0, %c0_i32 : i32, i32
  }
  func.func @transform_3(%arg0: i32) -> (i32, i32) {
    %c0_i32 = arith.constant 0 : i32
    %c0_i32_0 = arith.constant 0 : i32
    return %arg0, %c0_i32 : i32, i32
  }
  func.func @transform_4(%arg0: i32) -> (i32, i32) {
    %c0_i32 = arith.constant 0 : i32
    %c0_i32_0 = arith.constant 0 : i32
    %c0_i32_1 = arith.constant 0 : i32
    return %c0_i32, %c0_i32_0 : i32, i32
  }
  func.func @transform_5(%arg0: i32) -> (i32, i32, i32) {
    %c0_i32 = arith.constant 0 : i32
    %c0_i32_0 = arith.constant 0 : i32
    %c0_i32_1 = arith.constant 0 : i32
    return %arg0, %c0_i32, %c0_i32_0 : i32, i32, i32
  }
}

</mosaic_0001>

<llo_original>
// kernel: tpu_custom_call.1
$region0: #{tpu_custom_call.1}
  #allocation0 [shape = 'u32[]', space=smem, size = 0x4, offset = 0x4, fixed_abs, tag = 'smem constant byte address 0x4 - core index']
  #allocation1 [shape = 'u32[144,128]{1,0:T(1,128)}', space=vmem, size = 0x12000, scoped, tag = 'internal scratch']
  %s0 = inlined_call_operand.hbm [shape: f32[8,32], index: 0, kind: input, shape index: {}]
  %s1 = inlined_call_operand.hbm [shape: f32[8,32], index: 1, kind: input, shape index: {}]
  %s2 = inlined_call_operand.hbm [shape: f32[8,32], index: 2, kind: input, shape index: {}]
  %s3 = inlined_call_operand.hbm [shape: f32[8,32], index: 3, kind: input, shape index: {}]
  %s4 = inlined_call_operand.hbm [shape: f32[32,32], index: 4, kind: input, shape index: {}]
  %s5 = inlined_call_operand.hbm [shape: f32[1,8,128], index: 5, kind: output, shape index: {}]
  %s6 = sld [smem:[#allocation0]]
  $region50: #{tpu_custom_call.1} parent=0
    _
  %s8 = ssub.s32 1, %s6
  %s9 = scalar_select 0, %s8, %s6
  $region1: #{tpu_custom_call.1} parent=0
    #allocation2 [shape = 'u8[4096]{0}', space=vmem, size = 0x1000, scoped, tag = 'input window, operand 0, single buffered']
    #allocation3 [shape = 's32[1]{0}', space=sflag, size = 0x4, scoped, tag = 'scoped memory for tpu_custom_call.1']
    #allocation4 [shape = 's32[1]{0}', space=sflag, size = 0x4, scoped, tag = 'scoped memory for tpu_custom_call.1']
    #allocation5 [shape = 'u8[4096]{0}', space=vmem, size = 0x1000, scoped, tag = 'input window, operand 1, single buffered']
    #allocation6 [shape = 's32[1]{0}', space=sflag, size = 0x4, scoped, tag = 'scoped memory for tpu_custom_call.1']
    #allocation7 [shape = 'u8[4096]{0}', space=vmem, size = 0x1000, scoped, tag = 'input window, operand 2, single buffered']
    #allocation8 [shape = 'u8[4096]{0}', space=vmem, size = 0x1000, scoped, tag = 'input window, operand 3, single buffered']
    #allocation9 [shape = 's32[1]{0}', space=sflag, size = 0x4, scoped, tag = 'scoped memory for tpu_custom_call.1']
    #allocation10 [shape = 'u8[16384]{0}', space=vmem, size = 0x4000, scoped, tag = 'input window, operand 4, single buffered']
    #allocation11 [shape = 'u8[4096]{0}', space=vmem, size = 0x1000, scoped, tag = 'output window, operand 0, single buffered']
    %10 = vsyncpa [#allocation3], 0
    %11 = vsyncpa [#allocation6], 0
    %12 = vsyncpa [#allocation9], 0
    %13 = vsyncpa [#allocation4], 0
    // Predicated region
    $region2: #{tpu_custom_call.1} parent=1 // pred_check
      _
    $region3: #{tpu_custom_call.1} parent=1 // pred_check_branch
      %15 = sbr.rel (0) target = $region5
    $region4: #{tpu_custom_call.1} parent=1 // pred_region
      %s17 = ssub.s32 128, 128
      %18 = vsyncadd [#allocation3], %s17
      %s20 = sshll.u32 [#allocation2], 4
      %s21 = int_to_ptr.vmem [resolvable:$true] %s20
      %23 = dma.hbm_to_vmem [thread:$0]  %s0, 128, %s21, [#allocation3]
    $region5: #{tpu_custom_call.1} parent=1 // pred_fallthru
      _
    // Predicated region
    $region6: #{tpu_custom_call.1} parent=1 // pred_check
      _
    $region7: #{tpu_custom_call.1} parent=1 // pred_check_branch
      %25 = sbr.rel (0) target = $region9
    $region8: #{tpu_custom_call.1} parent=1 // pred_region
      %s27 = ssub.s32 128, 128
      %28 = vsyncadd [#allocation6], %s27
      %s30 = sshll.u32 [#allocation5], 4
      %s31 = int_to_ptr.vmem [resolvable:$true] %s30
      %33 = dma.hbm_to_vmem [thread:$0]  %s1, 128, %s31, [#allocation6]
    $region9: #{tpu_custom_call.1} parent=1 // pred_fallthru
      _
    // Predicated region
    $region10: #{tpu_custom_call.1} parent=1 // pred_check
      _
    $region11: #{tpu_custom_call.1} parent=1 // pred_check_branch
      %35 = sbr.rel (0) target = $region13
    $region12: #{tpu_custom_call.1} parent=1 // pred_region
      %s37 = ssub.s32 128, 128
      %38 = vsyncadd [#allocation6], %s37
      %s40 = sshll.u32 [#allocation7], 4
      %s41 = int_to_ptr.vmem [resolvable:$true] %s40
      %43 = dma.hbm_to_vmem [thread:$0]  %s2, 128, %s41, [#allocation6]
    $region13: #{tpu_custom_call.1} parent=1 // pred_fallthru
      _
    // Predicated region
    $region14: #{tpu_custom_call.1} parent=1 // pred_check
      _
    $region15: #{tpu_custom_call.1} parent=1 // pred_check_branch
      %45 = sbr.rel (0) target = $region17
    $region16: #{tpu_custom_call.1} parent=1 // pred_region
      %s47 = ssub.s32 128, 128
      %48 = vsyncadd [#allocation9], %s47
      %s50 = sshll.u32 [#allocation8], 4
      %s51 = int_to_ptr.vmem [resolvable:$true] %s50
      %53 = dma.hbm_to_vmem [thread:$0]  %s3, 128, %s51, [#allocation9]
    $region17: #{tpu_custom_call.1} parent=1 // pred_fallthru
      _
    // Predicated region
    $region18: #{tpu_custom_call.1} parent=1 // pred_check
      _
    $region19: #{tpu_custom_call.1} parent=1 // pred_check_branch
      %55 = sbr.rel (0) target = $region21
    $region20: #{tpu_custom_call.1} parent=1 // pred_region
      %s57 = ssub.s32 512, 512
      %58 = vsyncadd [#allocation9], %s57
      %s59 = sshll.u32 [#allocation10], 4
      %s60 = int_to_ptr.vmem [resolvable:$true] %s59
      %65 = dma.hbm_to_vmem [thread:$0]  %s4, 512, %s60, [#allocation9], 128, 128, 8
    $region21: #{tpu_custom_call.1} parent=1 // pred_fallthru
      _
    // Predicated region
    $region22: #{tpu_custom_call.1} parent=1 // pred_check
      _
    $region23: #{tpu_custom_call.1} parent=1 // pred_check_branch
      %67 = sbr.rel (0) target = $region25
    $region24: #{tpu_custom_call.1} parent=1 // pred_region
      %68 = dma.done [#allocation3], 128
    $region25: #{tpu_custom_call.1} parent=1 // pred_fallthru
      _
    // Predicated region
    $region26: #{tpu_custom_call.1} parent=1 // pred_check
      _
    $region27: #{tpu_custom_call.1} parent=1 // pred_check_branch
      %70 = sbr.rel (0) target = $region29
    $region28: #{tpu_custom_call.1} parent=1 // pred_region
      %71 = dma.done [#allocation6], 128
    $region29: #{tpu_custom_call.1} parent=1 // pred_fallthru
      _
    // Predicated region
    $region30: #{tpu_custom_call.1} parent=1 // pred_check
      _
    $region31: #{tpu_custom_call.1} parent=1 // pred_check_branch
      %73 = sbr.rel (0) target = $region33
    $region32: #{tpu_custom_call.1} parent=1 // pred_region
      %74 = dma.done [#allocation6], 128
    $region33: #{tpu_custom_call.1} parent=1 // pred_fallthru
      _
    // Predicated region
    $region34: #{tpu_custom_call.1} parent=1 // pred_check
      _
    $region35: #{tpu_custom_call.1} parent=1 // pred_check_branch
      %76 = sbr.rel (0) target = $region37
    $region36: #{tpu_custom_call.1} parent=1 // pred_region
      %77 = dma.done [#allocation9], 128
    $region37: #{tpu_custom_call.1} parent=1 // pred_fallthru
      _
    // Predicated region
    $region38: #{tpu_custom_call.1} parent=1 // pred_check
      _
    $region39: #{tpu_custom_call.1} parent=1 // pred_check_branch
      %79 = sbr.rel (0) target = $region41
    $region40: #{tpu_custom_call.1} parent=1 // pred_region
      %80 = dma.done [#allocation9], 512
    $region41: #{tpu_custom_call.1} parent=1 // pred_fallthru
      _
    %v81 = vld [vmem:[#allocation2] sm:$0xff]
    %v82 = vld [vmem:[#allocation5] sm:$0xff]
    %v83 = vsub.f32 %v81, %v82
    %v84 = vld [vmem:[#allocation7] sm:$0xff]
    %v85 = vmul.f32 %v84, 0.4
    %v86 = vld [vmem:[#allocation8] sm:$0xff]
    %v87 = vmul.f32 %v86, 0.6
    %v88 = vadd.f32 %v85, %v87
    %v89 = vld [vmem:[#allocation10] sm:$0xff]
    %v90 = vld [vmem:[#allocation10 + $0x8] sm:$0xff]
    %v91 = vld [vmem:[#allocation10 + $0x10] sm:$0xff]
    %v92 = vld [vmem:[#allocation10 + $0x18] sm:$0xff]
    %vm93 = vcmask 261120
    %v95 = vsel %vm93, %v88, 0
    %97 = vmatprep.subr.mxu0 0.0
    %98 = vmatpush1.msra.mxu0 0.0
    %99 = vmatprep.subr.mxu0 0.0
    %100 = vmatpush1.msra.mxu0 0.0
    %101 = vmatprep.subr.mxu0 0.0
    %102 = vmatpush1.msra.mxu0 0.0
    %103 = vmatprep.subr.mxu0 0.0
    %104 = vmatpush1.msra.mxu0 0.0
    %105 = vmatprep.subr.mxu0 0.0
    %106 = vmatpush1.msra.mxu0 0.0
    %107 = vmatprep.subr.mxu0 0.0
    %108 = vmatpush1.msra.mxu0 0.0
    %109 = vmatprep.subr.mxu0 0.0
    %110 = vmatpush1.msra.mxu0 0.0
    %111 = vmatprep.subr.mxu0 0.0
    %112 = vmatpush1.msra.mxu0 0.0
    %113 = vmatprep.subr.mxu0 0.0
    %114 = vmatpush1.msra.mxu0 0.0
    %115 = vmatprep.subr.mxu0 0.0
    %116 = vmatpush1.msra.mxu0 0.0
    %117 = vmatprep.subr.mxu0 0.0
    %118 = vmatpush1.msra.mxu0 0.0
    %119 = vmatprep.subr.mxu0 0.0
    %120 = vmatpush1.msra.mxu0 0.0
    %121 = vmatprep.subr.mxu0 0.0
    %122 = vmatpush1.msra.mxu0 %v92
    %123 = vmatprep.subr.mxu0 0.0
    %124 = vmatpush1.msra.mxu0 %v91
    %125 = vmatprep.subr.mxu0 0.0
    %126 = vmatpush1.msra.mxu0 %v90
    %127 = vmatprep.subr.mxu0 0.0
    %128 = vmatpush1.msra.mxu0 %v89
    %129 = vmatprep.subr.mxu0 0.0
    %130 = vmatpush2.msra.mxu0 0.0
    %131 = vmatprep.subr.mxu0 0.0
    %132 = vmatpush2.msra.mxu0 0.0
    %133 = vmatprep.subr.mxu0 0.0
    %134 = vmatpush2.msra.mxu0 0.0
    %135 = vmatprep.subr.mxu0 0.0
    %136 = vmatpush2.msra.mxu0 0.0
    %137 = vmatprep.subr.mxu0 0.0
    %138 = vmatpush2.msra.mxu0 0.0
    %139 = vmatprep.subr.mxu0 0.0
    %140 = vmatpush2.msra.mxu0 0.0
    %141 = vmatprep.subr.mxu0 0.0
    %142 = vmatpush2.msra.mxu0 0.0
    %143 = vmatprep.subr.mxu0 0.0
    %144 = vmatpush2.msra.mxu0 0.0
    %145 = vmatprep.subr.mxu0 0.0
    %146 = vmatpush2.msra.mxu0 0.0
    %147 = vmatprep.subr.mxu0 0.0
    %148 = vmatpush2.msra.mxu0 0.0
    %149 = vmatprep.subr.mxu0 0.0
    %150 = vmatpush2.msra.mxu0 0.0
    %151 = vmatprep.subr.mxu0 0.0
    %152 = vmatpush2.msra.mxu0 0.0
    %153 = vmatprep.subr.mxu0 0.0
    %154 = vmatpush2.msra.mxu0 0.0
    %155 = vmatprep.subr.mxu0 0.0
    %156 = vmatpush2.msra.mxu0 0.0
    %157 = vmatprep.subr.mxu0 0.0
    %158 = vmatpush2.msra.mxu0 0.0
    %159 = vmatprep.subr.mxu0 0.0
    %160 = vmatpush2.msra.mxu0 0.0
    %161 = vmatprep.mubr.f32.mxu0 0.0
    %162 = vmatmul.mubr.f32.gmra.mxu0 %v95
    %v163 = vpop.f32.mrf.mxu0
    %v164 = vadd.f32 0.0, %v163
    %v165 = vpop.f32.mrf.mxu0
    %166 = vdwg.mxu0
    %v167 = vmul.f32 %v83, %v164
    %v168 = vsel %vm93, %v167, 0.0
    %169 = vadd.xlane.f32.xlu0 %v168
    %v170 = vpop.xlane.xlu0 %169
    %v171 = vadd.f32 %v170, 0.2
    %v172 = vmax.f32 %v171, 0.0
    %v173 = vlaneseq
    %v174 = vshrl.u32 %v173, 7
    %s175 = smul.u32 0, 8
    %v176 = vstv %s175
    %v177 = vadd.s32 %v174, %v176
    %vm178 = vcmp.lt.s32.totalorder %v177, 8
    %v179 = vsel %vm178, %v172, 0.0
    %vm180 = vcmask 7168
    %v181 = vsel %vm180, %v179, 0.0
    %182 = vadd.xlane.f32.xlu0 %v181
    %v183 = vpop.xlane.xlu0 %182
    %v184 = vrot.slane %v183, 4
    %v185 = vadd.f32 %v183, %v184
    %v186 = vrot.slane %v185, 2
    %v187 = vadd.f32 %v185, %v186
    %v188 = vrot.slane %v187, 1
    %v189 = vadd.f32 %v187, %v188
    %s190 = vtos %v189
    %v191 = vstv %s190
    %192 = vst [vmem:[#allocation11] sm:$0xff] %v191
    // Predicated region
    $region42: #{tpu_custom_call.1} parent=1 // pred_check
      _
    $region43: #{tpu_custom_call.1} parent=1 // pred_check_branch
      %194 = sbr.rel (0) target = $region45
    $region44: #{tpu_custom_call.1} parent=1 // pred_region
      %s196 = ssub.s32 128, 128
      %197 = vsyncadd [#allocation4], %s196
      %s199 = sshll.u32 [#allocation11], 4
      %s200 = int_to_ptr.vmem [resolvable:$true] %s199
      %202 = dma.vmem_to_hbm [thread:$0]  %s200, 128, %s5, [#allocation4]
    $region45: #{tpu_custom_call.1} parent=1 // pred_fallthru
      _
    // Predicated region
    $region46: #{tpu_custom_call.1} parent=1 // pred_check
      _
    $region47: #{tpu_custom_call.1} parent=1 // pred_check_branch
      %204 = sbr.rel (0) target = $region49
    $region48: #{tpu_custom_call.1} parent=1 // pred_region
      %205 = dma.done [#allocation4], 128
    $region49: #{tpu_custom_call.1} parent=1 // pred_fallthru
      _
    %206 = vsyncpa [#allocation3], 1
    %207 = vsyncpa [#allocation6], 1
    %208 = vsyncpa [#allocation9], 1
    %209 = vsyncpa [#allocation4], 1

</llo_original>
